<compile_context>
chip_gen: v6e
topology: v6e:2x2x1
jax: 0.10.0
libtpu: 0.0.40
codegen_flags: <defaults>
</compile_context>

<pallas_src>
import functools

import jax
import jax.numpy as jnp
from jax.experimental import pallas as pl
from jax.experimental.pallas import tpu as pltpu


def _round_up(x, m):
    return ((x + m - 1) // m) * m


def _pick_tile_n(n, c, itemsize, budget_bytes=24 << 20):
    """Largest multiple-of-8 row tile whose double-buffered blocks fit the budget."""
    # double-buffered logits rows + double-buffered (TILE_N,1) i32 targets
    # (a 1-lane int32 block pads to 128 lanes in VMEM).
    per_row = 2 * c * itemsize + 2 * 128 * 4
    t = max(8, (budget_bytes // per_row) // 8 * 8)
    t = min(t, 1024)                 # diminishing returns past ~1K rows
    t = min(t, _round_up(n, 8))      # no point exceeding the (padded) batch
    return int(t)


def _focal_loss_kernel(logits_ref, targets_ref, out_ref, acc_ref,
                       *, alpha, gamma, n_total, tile_n):
    i = pl.program_id(0)

    @pl.when(i == 0)
    def _():
        acc_ref[...] = jnp.zeros_like(acc_ref)

    logits = logits_ref[...].astype(jnp.float32)            # (TILE_N, C)
    tgt = targets_ref[...]                                   # (TILE_N, 1) int32
    tn, c = logits.shape

    # Numerically-stable log-softmax pieces.
    row_max = jnp.max(logits, axis=-1, keepdims=True)        # (TILE_N, 1)
    shifted = logits - row_max                                # (TILE_N, C)
    lse = jnp.log(jnp.sum(jnp.exp(shifted), axis=-1, keepdims=True))  # (TILE_N, 1)

    # Gather target logit via one-hot compare (no dynamic gather on TPU).
    class_ids = jax.lax.broadcasted_iota(jnp.int32, (tn, c), 1)
    onehot = class_ids == tgt                                 # (TILE_N, C) bool
    tgt_shifted = jnp.sum(jnp.where(onehot, shifted, 0.0), axis=-1, keepdims=True)

    ce = lse - tgt_shifted                                    # (TILE_N, 1) per-sample CE
    pt = jnp.exp(-ce)
    one_minus_pt = jnp.maximum(1.0 - pt, 0.0)                 # clamp: avoid NaN from pow

    # Integer-gamma fast path (pure VPU multiplies); general path uses pow.
    if float(gamma) == int(gamma) and 0 <= int(gamma) <= 8:
        mod = jnp.ones_like(one_minus_pt)
        for _ in range(int(gamma)):
            mod = mod * one_minus_pt
    else:
        mod = jnp.power(one_minus_pt, gamma)

    f_loss = alpha * mod * ce                                 # (TILE_N, 1)

    # Mask padded rows of the tail tile so they contribute 0 to the sum.
    row_ids = i * tile_n + jax.lax.broadcasted_iota(jnp.int32, (tn, 1), 0)
    f_loss = jnp.where(row_ids < n_total, f_loss, 0.0)

    acc_ref[...] += jnp.sum(f_loss, keepdims=True)

    @pl.when(i == pl.num_programs(0) - 1)
    def _():
        out_ref[...] = acc_ref[...] / n_total


def focal_loss(logits, targets, alpha=1.0, gamma=2.0, tile_n=None):
    """logits: (N, C) float (any dtype), targets: (N,) int class ids. Returns scalar f32."""
    n, c = logits.shape
    targets2d = targets.astype(jnp.int32).reshape(n, 1)

    itemsize = jnp.dtype(logits.dtype).itemsize
    if tile_n is None:
        tile_n = _pick_tile_n(n, c, itemsize)
    tile_n = int(tile_n)
    num_tiles = pl.cdiv(n, tile_n)

    # Explicit scoped-VMEM budget: double-buffered input blocks + slack.
    logits_bytes = 2 * tile_n * c * itemsize
    targets_bytes = 2 * tile_n * 128 * 4
    vmem_limit = int(min(max(logits_bytes + targets_bytes + (4 << 20), 16 << 20), 96 << 20))

    kernel = functools.partial(
        _focal_loss_kernel,
        alpha=float(alpha), gamma=float(gamma),
        n_total=int(n), tile_n=tile_n,
    )

    out = pl.pallas_call(
        kernel,
        out_shape=jax.ShapeDtypeStruct((1, 1), jnp.float32),
        grid_spec=pltpu.PrefetchScalarGridSpec(
            num_scalar_prefetch=0,
            grid=(num_tiles,),
            in_specs=[
                pl.BlockSpec((tile_n, c), lambda i: (i, 0)),   # logits tile (native dtype)
                pl.BlockSpec((tile_n, 1), lambda i: (i, 0)),   # targets tile
            ],
            out_specs=pl.BlockSpec((1, 1), lambda i: (0, 0)),  # resident scalar, written once
            scratch_shapes=[pltpu.VMEM((1, 1), jnp.float32)],  # running sum
        ),
        compiler_params=pltpu.CompilerParams(
            dimension_semantics=("arbitrary",),
            vmem_limit_bytes=vmem_limit,
        ),
    )(logits, targets2d)
    return out[0, 0]


def _focal_loss_ref(logits, targets, alpha=1.0, gamma=2.0):
    logp = jax.nn.log_softmax(logits.astype(jnp.float32), axis=-1)
    ce = -jnp.take_along_axis(logp, targets[:, None].astype(jnp.int32), axis=-1)[:, 0]
    pt = jnp.exp(-ce)
    return jnp.mean(alpha * (1.0 - pt) ** gamma * ce)


if __name__ == "__main__":
    key = jax.random.PRNGKey(0)
    k1, k2, k3, k4 = jax.random.split(key, 4)

    # Case 1: single tile, default gamma=2 (integer fast path), f32 logits.
    N, C = 64, 32
    logits = jax.random.normal(k1, (N, C), dtype=jnp.float32) * 2.0
    targets = jax.random.randint(k2, (N,), 0, C, dtype=jnp.int32)
    out = jax.block_until_ready(focal_loss(logits, targets, alpha=1.0, gamma=2.0))
    ref = _focal_loss_ref(logits, targets, alpha=1.0, gamma=2.0)
    assert jnp.allclose(out, ref, rtol=1e-5, atol=1e-5), (out, ref)

    # Case 2: ragged batch + forced small tile -> multi-step grid, tail masking,
    # accumulator across steps, gamma=3 fast path, alpha != 1.
    N2, C2 = 50, 32
    logits2 = jax.random.normal(k3, (N2, C2), dtype=jnp.float32) * 2.0
    targets2 = jax.random.randint(k4, (N2,), 0, C2, dtype=jnp.int32)
    out2 = jax.block_until_ready(focal_loss(logits2, targets2, alpha=0.25, gamma=3.0, tile_n=16))
    ref2 = _focal_loss_ref(logits2, targets2, alpha=0.25, gamma=3.0)
    assert jnp.allclose(out2, ref2, rtol=1e-5, atol=1e-5), (out2, ref2)

    print("KERNEL_OK")
</pallas_src>

<mosaic_0001>
module attributes {stable_mosaic.version = 11 : i64} {
  func.func @_focal_loss_kernel(%arg0: i32, %arg1: memref<64x32xf32, #tpu.memory_space<vmem>>, %arg2: memref<64x1xi32, #tpu.memory_space<vmem>>, %arg3: memref<1x1xf32, #tpu.memory_space<vmem>>, %arg4: memref<1x1xf32, #tpu.memory_space<vmem>>) attributes {dimension_semantics = [#tpu.dimension_semantics<arbitrary>], iteration_bounds = array<i64: 1>, scalar_prefetch = 0 : i64, scratch_operands = 1 : i64, tpu.core_type = #tpu.core_type<tc>, window_params = [{transform_indices = @transform_0, window_bounds = array<i64: 64, 32>}, {transform_indices = @transform_1, window_bounds = array<i64: 64, 1>}, {pipeline_mode = #tpu.pipeline_mode<synchronous>, transform_indices = @transform_2, window_bounds = array<i64: 1, 1>}]} {
    %c0_i32 = arith.constant 0 : i32
    %0 = arith.cmpi eq, %arg0, %c0_i32 : i32
    %1 = arith.extui %0 : i1 to i32
    %c0_i32_0 = arith.constant 0 : i32
    %2 = arith.cmpi ne, %1, %c0_i32_0 : i32
    scf.if %2 {
      %cst_21 = arith.constant 0.000000e+00 : f32
      %53 = vector.broadcast %cst_21 : f32 to vector<1x1xf32>
      %c0_22 = arith.constant 0 : index
      %c0_23 = arith.constant 0 : index
      %54 = vector.load %arg4[%c0_22, %c0_23] : memref<1x1xf32, #tpu.memory_space<vmem>>, vector<1x1xf32>
      tpu.vector_store %arg4[%c0_22, %c0_23], %53 {strides = array<i32>} : memref<1x1xf32, #tpu.memory_space<vmem>>, vector<1x1xf32>,
    } else {
    }
    %c0 = arith.constant 0 : index
    %c0_1 = arith.constant 0 : index
    %3 = vector.load %arg1[%c0, %c0_1] : memref<64x32xf32, #tpu.memory_space<vmem>>, vector<64x32xf32>
    %c0_2 = arith.constant 0 : index
    %c0_3 = arith.constant 0 : index
    %4 = vector.load %arg2[%c0_2, %c0_3] : memref<64x1xi32, #tpu.memory_space<vmem>>, vector<64x1xi32>
    %cst = arith.constant dense<0xFF800000> : vector<64xf32>
    %5 = vector.multi_reduction <maximumf>, %3, %cst [1] : vector<64x32xf32> to vector<64xf32>
    %6 = vector.shape_cast %5 : vector<64xf32> to vector<64x1xf32>
    %7 = vector.broadcast %6 : vector<64x1xf32> to vector<64x32xf32>
    %8 = arith.subf %3, %7 : vector<64x32xf32>
    %9 = math.exp %8 : vector<64x32xf32>
    %cst_4 = arith.constant dense<0.000000e+00> : vector<64xf32>
    %10 = vector.multi_reduction <add>, %9, %cst_4 [1] : vector<64x32xf32> to vector<64xf32>
    %11 = vector.shape_cast %10 : vector<64xf32> to vector<64x1xf32>
    %12 = math.log %11 : vector<64x1xf32>
    %13 = tpu.iota {dimensions = array<i32: 1>} : vector<64x32xi32>
    %14 = vector.broadcast %4 : vector<64x1xi32> to vector<64x32xi32>
    %15 = arith.cmpi eq, %13, %14 : vector<64x32xi32>
    %cst_5 = arith.constant 0.000000e+00 : f32
    %16 = vector.broadcast %cst_5 : f32 to vector<64x32xf32>
    %17 = arith.select %15, %8, %16 : vector<64x32xi1>, vector<64x32xf32>
    %cst_6 = arith.constant dense<0.000000e+00> : vector<64xf32>
    %18 = vector.multi_reduction <add>, %17, %cst_6 [1] : vector<64x32xf32> to vector<64xf32>
    %19 = vector.shape_cast %18 : vector<64xf32> to vector<64x1xf32>
    %20 = arith.subf %12, %19 : vector<64x1xf32>
    %cst_7 = arith.constant 0.000000e+00 : f32
    %21 = vector.broadcast %cst_7 : f32 to vector<64x1xf32>
    %22 = arith.subf %21, %20 : vector<64x1xf32>
    %23 = math.exp %22 : vector<64x1xf32>
    %cst_8 = arith.constant 1.000000e+00 : f32
    %24 = vector.broadcast %cst_8 : f32 to vector<64x1xf32>
    %25 = arith.subf %24, %23 : vector<64x1xf32>
    %cst_9 = arith.constant 0.000000e+00 : f32
    %26 = vector.broadcast %cst_9 : f32 to vector<64x1xf32>
    %27 = arith.maximumf %25, %26 : vector<64x1xf32>
    %cst_10 = arith.constant 1.000000e+00 : f32
    %28 = vector.broadcast %cst_10 : f32 to vector<64x1xf32>
    %29 = arith.mulf %28, %27 : vector<64x1xf32>
    %30 = arith.mulf %29, %27 : vector<64x1xf32>
    %cst_11 = arith.constant 1.000000e+00 : f32
    %31 = vector.broadcast %cst_11 : f32 to vector<64x1xf32>
    %32 = arith.mulf %31, %30 : vector<64x1xf32>
    %33 = arith.mulf %32, %20 : vector<64x1xf32>
    %c64_i32 = arith.constant 64 : i32
    %34 = arith.muli %arg0, %c64_i32 : i32
    %35 = tpu.iota {dimensions = array<i32: 0>} : vector<64x1xi32>
    %36 = vector.broadcast %34 : i32 to vector<64x1xi32>
    %37 = arith.addi %36, %35 : vector<64x1xi32>
    %c64_i32_12 = arith.constant 64 : i32
    %38 = vector.broadcast %c64_i32_12 : i32 to vector<64x1xi32>
    %39 = arith.cmpi slt, %37, %38 : vector<64x1xi32>
    %cst_13 = arith.constant 0.000000e+00 : f32
    %40 = vector.broadcast %cst_13 : f32 to vector<64x1xf32>
    %41 = arith.select %39, %33, %40 : vector<64x1xi1>, vector<64x1xf32>
    %c0_14 = arith.constant 0 : index
    %c0_15 = arith.constant 0 : index
    %42 = vector.load %arg4[%c0_14, %c0_15] : memref<1x1xf32, #tpu.memory_space<vmem>>, vector<1x1xf32>
    %43 = vector.shape_cast %41 : vector<64x1xf32> to vector<1x64x1xf32>
    %cst_16 = arith.constant dense<0.000000e+00> : vector<1xf32>
    %44 = vector.multi_reduction <add>, %43, %cst_16 [1, 2] : vector<1x64x1xf32> to vector<1xf32>
    %45 = vector.shape_cast %44 : vector<1xf32> to vector<1x1x1xf32>
    %46 = vector.extract %45[0, 0, 0] : f32 from vector<1x1x1xf32>
    %47 = vector.broadcast %46 : f32 to vector<1x1xf32>
    %48 = arith.addf %42, %47 : vector<1x1xf32>
    %c0_17 = arith.constant 0 : index
    %c0_18 = arith.constant 0 : index
    %49 = vector.load %arg4[%c0_17, %c0_18] : memref<1x1xf32, #tpu.memory_space<vmem>>, vector<1x1xf32>
    tpu.vector_store %arg4[%c0_17, %c0_18], %48 {strides = array<i32>} : memref<1x1xf32, #tpu.memory_space<vmem>>, vector<1x1xf32>,
    %c0_i32_19 = arith.constant 0 : i32
    %50 = arith.cmpi eq, %arg0, %c0_i32_19 : i32
    %51 = arith.extui %50 : i1 to i32
    %c0_i32_20 = arith.constant 0 : i32
    %52 = arith.cmpi ne, %51, %c0_i32_20 : i32
    scf.if %52 {
      %c0_21 = arith.constant 0 : index
      %c0_22 = arith.constant 0 : index
      %53 = vector.load %arg4[%c0_21, %c0_22] : memref<1x1xf32, #tpu.memory_space<vmem>>, vector<1x1xf32>
      %cst_23 = arith.constant 6.400000e+01 : f32
      %54 = vector.broadcast %cst_23 : f32 to vector<1x1xf32>
      %55 = arith.divf %53, %54 : vector<1x1xf32>
      %c0_24 = arith.constant 0 : index
      %c0_25 = arith.constant 0 : index
      %56 = vector.load %arg3[%c0_24, %c0_25] : memref<1x1xf32, #tpu.memory_space<vmem>>, vector<1x1xf32>
      tpu.vector_store %arg3[%c0_24, %c0_25], %55 {strides = array<i32>} : memref<1x1xf32, #tpu.memory_space<vmem>>, vector<1x1xf32>,
    } else {
    }
    return
  }
  func.func @transform_0(%arg0: i32) -> (i32, i32) {
    %c0_i32 = arith.constant 0 : i32
    %c0_i32_0 = arith.constant 0 : i32
    return %arg0, %c0_i32 : i32, i32
  }
  func.func @transform_1(%arg0: i32) -> (i32, i32) {
    %c0_i32 = arith.constant 0 : i32
    %c0_i32_0 = arith.constant 0 : i32
    return %arg0, %c0_i32 : i32, i32
  }
  func.func @transform_2(%arg0: i32) -> (i32, i32) {
    %c0_i32 = arith.constant 0 : i32
    %c0_i32_0 = arith.constant 0 : i32
    %c0_i32_1 = arith.constant 0 : i32
    return %c0_i32, %c0_i32_0 : i32, i32
  }
}

</mosaic_0001>

<llo_original>
// kernel: tpu_custom_call.1
$region0: #{tpu_custom_call.1}
  #allocation0 [shape = 'u32[]', space=smem, size = 0x4, offset = 0x4, fixed_abs, tag = 'smem constant byte address 0x4 - core index']
  #allocation1 [shape = 'u32[144,128]{1,0:T(1,128)}', space=vmem, size = 0x12000, scoped, tag = 'internal scratch']
  #allocation2 [shape = 'f32[1,1]{1,0:T(1,128)}', space=vmem, size = 0x200, scoped, tag = 'scratch operand']
  %s0 = inlined_call_operand.vmem [shape: f32[64,32], index: 0, kind: input, shape index: {}]
  %s1 = inlined_call_operand.vmem [shape: s32[64,1], index: 1, kind: input, shape index: {}]
  %s2 = inlined_call_operand.hbm [shape: f32[1,1], index: 2, kind: output, shape index: {}]
  %s3 = sld [smem:[#allocation0]]
  $region26: #{tpu_custom_call.1} parent=0
    _
  %s5 = ssub.s32 1, %s3
  %s6 = scalar_select 0, %s5, %s3
  $region1: #{tpu_custom_call.1} parent=0
    #allocation3 [shape = 'u8[512]{0}', space=vmem, size = 0x400, scoped, tag = 'output window, operand 0, single buffered']
    #allocation4 [shape = 's32[1]{0}', space=sflag, size = 0x4, scoped, tag = 'scoped memory for tpu_custom_call.1']
    %7 = vsyncpa [#allocation4], 0
    // Predicated region
    $region2: #{tpu_custom_call.1} parent=1 // pred_check
      _
    $region3: #{tpu_custom_call.1} parent=1 // pred_check_branch
      %9 = sbr.rel (0) target = $region5
    $region4: #{tpu_custom_call.1} parent=1 // pred_region
      _
    $region5: #{tpu_custom_call.1} parent=1 // pred_fallthru
      _
    // Predicated region
    $region6: #{tpu_custom_call.1} parent=1 // pred_check
      _
    $region7: #{tpu_custom_call.1} parent=1 // pred_check_branch
      %11 = sbr.rel (0) target = $region9
    $region8: #{tpu_custom_call.1} parent=1 // pred_region
      _
    $region9: #{tpu_custom_call.1} parent=1 // pred_fallthru
      _
    %p12 = scmp.eq.s32.totalorder 0, 0
    // Predicated region
    $region10: #{tpu_custom_call.1} parent=1 // pred_check
      %p13 = pneg %p12
    $region11: #{tpu_custom_call.1} parent=1 // pred_check_branch
      %15 = sbr.rel (%p13) target = $region13
    $region12: #{tpu_custom_call.1} parent=1 // pred_region
      %vm16 = vcmask 0
      %17 = vst.msk [vmem:[#allocation2] sm:$0x1] %vm16, 0.0
    $region13: #{tpu_custom_call.1} parent=1 // pred_fallthru
      _
    %v18 = vld [vmem:[%s0] sm:$0xff]
    %v19 = vld [vmem:[%s0 + $0x8] sm:$0xff]
    %v20 = vld [vmem:[%s0 + $0x10] sm:$0xff]
    %v21 = vld [vmem:[%s0 + $0x18] sm:$0xff]
    %v22 = vld [vmem:[%s0 + $0x20] sm:$0xff]
    %v23 = vld [vmem:[%s0 + $0x28] sm:$0xff]
    %v24 = vld [vmem:[%s0 + $0x30] sm:$0xff]
    %v25 = vld [vmem:[%s0 + $0x38] sm:$0xff]
    %v26 = vld [vmem:[%s1] sm:$0xff]
    %v27 = vld [vmem:[%s1 + $0x8] sm:$0xff]
    %v28 = vld [vmem:[%s1 + $0x10] sm:$0xff]
    %v29 = vld [vmem:[%s1 + $0x18] sm:$0xff]
    %v30 = vld [vmem:[%s1 + $0x20] sm:$0xff]
    %v31 = vld [vmem:[%s1 + $0x28] sm:$0xff]
    %v32 = vld [vmem:[%s1 + $0x30] sm:$0xff]
    %v33 = vld [vmem:[%s1 + $0x38] sm:$0xff]
    %vm34 = vcmask 261120
    %v35 = vsel %vm34, %v18, -inf
    %36 = vmax.xlane.f32.xlu0 %v35
    %v37 = vpop.xlane.xlu0 %36
    %v38 = vsel %vm34, %v19, -inf
    %39 = vmax.xlane.f32.xlu0 %v38
    %v40 = vpop.xlane.xlu0 %39
    %v41 = vsel %vm34, %v20, -inf
    %42 = vmax.xlane.f32.xlu0 %v41
    %v43 = vpop.xlane.xlu0 %42
    %v44 = vsel %vm34, %v21, -inf
    %45 = vmax.xlane.f32.xlu0 %v44
    %v46 = vpop.xlane.xlu0 %45
    %v47 = vsel %vm34, %v22, -inf
    %48 = vmax.xlane.f32.xlu0 %v47
    %v49 = vpop.xlane.xlu0 %48
    %v50 = vsel %vm34, %v23, -inf
    %51 = vmax.xlane.f32.xlu0 %v50
    %v52 = vpop.xlane.xlu0 %51
    %v53 = vsel %vm34, %v24, -inf
    %54 = vmax.xlane.f32.xlu0 %v53
    %v55 = vpop.xlane.xlu0 %54
    %v56 = vsel %vm34, %v25, -inf
    %57 = vmax.xlane.f32.xlu0 %v56
    %v58 = vpop.xlane.xlu0 %57
    %v59 = vsub.f32 %v18, %v37
    %v60 = vsub.f32 %v19, %v40
    %v61 = vsub.f32 %v20, %v43
    %v62 = vsub.f32 %v21, %v46
    %v63 = vsub.f32 %v22, %v49
    %v64 = vsub.f32 %v23, %v52
    %v65 = vsub.f32 %v24, %v55
    %v66 = vsub.f32 %v25, %v58
    %v67 = vmul.f32 %v59, 1.442695
    %v68 = vpow.pop %v67
    %v69 = vmul.f32 %v60, 1.442695
    %v70 = vpow.pop %v69
    %v71 = vmul.f32 %v61, 1.442695
    %v72 = vpow.pop %v71
    %v73 = vmul.f32 %v62, 1.442695
    %v74 = vpow.pop %v73
    %v75 = vmul.f32 %v63, 1.442695
    %v76 = vpow.pop %v75
    %v77 = vmul.f32 %v64, 1.442695
    %v78 = vpow.pop %v77
    %v79 = vmul.f32 %v65, 1.442695
    %v80 = vpow.pop %v79
    %v81 = vmul.f32 %v66, 1.442695
    %v82 = vpow.pop %v81
    %v83 = vsel %vm34, %v68, 0.0
    %84 = vadd.xlane.f32.xlu0 %v83
    %v85 = vpop.xlane.xlu0 %84
    %v86 = vsel %vm34, %v70, 0.0
    %87 = vadd.xlane.f32.xlu0 %v86
    %v88 = vpop.xlane.xlu0 %87
    %v89 = vsel %vm34, %v72, 0.0
    %90 = vadd.xlane.f32.xlu0 %v89
    %v91 = vpop.xlane.xlu0 %90
    %v92 = vsel %vm34, %v74, 0.0
    %93 = vadd.xlane.f32.xlu0 %v92
    %v94 = vpop.xlane.xlu0 %93
    %v95 = vsel %vm34, %v76, 0.0
    %96 = vadd.xlane.f32.xlu0 %v95
    %v97 = vpop.xlane.xlu0 %96
    %v98 = vsel %vm34, %v78, 0.0
    %99 = vadd.xlane.f32.xlu0 %v98
    %v100 = vpop.xlane.xlu0 %99
    %v101 = vsel %vm34, %v80, 0.0
    %102 = vadd.xlane.f32.xlu0 %v101
    %v103 = vpop.xlane.xlu0 %102
    %v104 = vsel %vm34, %v82, 0.0
    %105 = vadd.xlane.f32.xlu0 %v104
    %v106 = vpop.xlane.xlu0 %105
    %v107 = vlog2.pop %v85
    %v108 = vmul.f32 %v107, 0.6931472
    %v109 = vlog2.pop %v88
    %v110 = vmul.f32 %v109, 0.6931472
    %v111 = vlog2.pop %v91
    %v112 = vmul.f32 %v111, 0.6931472
    %v113 = vlog2.pop %v94
    %v114 = vmul.f32 %v113, 0.6931472
    %v115 = vlog2.pop %v97
    %v116 = vmul.f32 %v115, 0.6931472
    %v117 = vlog2.pop %v100
    %v118 = vmul.f32 %v117, 0.6931472
    %v119 = vlog2.pop %v103
    %v120 = vmul.f32 %v119, 0.6931472
    %v121 = vlog2.pop %v106
    %v122 = vmul.f32 %v121, 0.6931472
    %v123 = vlaneseq
    %v124 = vand.u32 %v123, 127
    %125 = vset.pattern.permute.xlu0 0
    %126 = vperm.xlu0 %125, %v26
    %v127 = vpop.permute.xlu0 %126
    %128 = vset.pattern.permute.xlu0 0
    %129 = vperm.xlu0 %128, %v27
    %v130 = vpop.permute.xlu0 %129
    %131 = vset.pattern.permute.xlu0 0
    %132 = vperm.xlu0 %131, %v28
    %v133 = vpop.permute.xlu0 %132
    %134 = vset.pattern.permute.xlu0 0
    %135 = vperm.xlu0 %134, %v29
    %v136 = vpop.permute.xlu0 %135
    %137 = vset.pattern.permute.xlu0 0
    %138 = vperm.xlu0 %137, %v30
    %v139 = vpop.permute.xlu0 %138
    %140 = vset.pattern.permute.xlu0 0
    %141 = vperm.xlu0 %140, %v31
    %v142 = vpop.permute.xlu0 %141
    %143 = vset.pattern.permute.xlu0 0
    %144 = vperm.xlu0 %143, %v32
    %v145 = vpop.permute.xlu0 %144
    %146 = vset.pattern.permute.xlu0 0
    %147 = vperm.xlu0 %146, %v33
    %v148 = vpop.permute.xlu0 %147
    %vm149 = vcmp.eq.s32.totalorder %v124, %v127
    %vm150 = vcmp.eq.s32.totalorder %v124, %v130
    %vm151 = vcmp.eq.s32.totalorder %v124, %v133
    %vm152 = vcmp.eq.s32.totalorder %v124, %v136
    %vm153 = vcmp.eq.s32.totalorder %v124, %v139
    %vm154 = vcmp.eq.s32.totalorder %v124, %v142
    %vm155 = vcmp.eq.s32.totalorder %v124, %v145
    %vm156 = vcmp.eq.s32.totalorder %v124, %v148
    %v157 = vsel %vm149, %v59, 0.0
    %v158 = vsel %vm150, %v60, 0.0
    %v159 = vsel %vm151, %v61, 0.0
    %v160 = vsel %vm152, %v62, 0.0
    %v161 = vsel %vm153, %v63, 0.0
    %v162 = vsel %vm154, %v64, 0.0
    %v163 = vsel %vm155, %v65, 0.0
    %v164 = vsel %vm156, %v66, 0.0
    %v165 = vsel %vm34, %v157, 0.0
    %166 = vadd.xlane.f32.xlu0 %v165
    %v167 = vpop.xlane.xlu0 %166
    %v168 = vsel %vm34, %v158, 0.0
    %169 = vadd.xlane.f32.xlu0 %v168
    %v170 = vpop.xlane.xlu0 %169
    %v171 = vsel %vm34, %v159, 0.0
    %172 = vadd.xlane.f32.xlu0 %v171
    %v173 = vpop.xlane.xlu0 %172
    %v174 = vsel %vm34, %v160, 0.0
    %175 = vadd.xlane.f32.xlu0 %v174
    %v176 = vpop.xlane.xlu0 %175
    %v177 = vsel %vm34, %v161, 0.0
    %178 = vadd.xlane.f32.xlu0 %v177
    %v179 = vpop.xlane.xlu0 %178
    %v180 = vsel %vm34, %v162, 0.0
    %181 = vadd.xlane.f32.xlu0 %v180
    %v182 = vpop.xlane.xlu0 %181
    %v183 = vsel %vm34, %v163, 0.0
    %184 = vadd.xlane.f32.xlu0 %v183
    %v185 = vpop.xlane.xlu0 %184
    %v186 = vsel %vm34, %v164, 0.0
    %187 = vadd.xlane.f32.xlu0 %v186
    %v188 = vpop.xlane.xlu0 %187
    %v189 = vsub.f32 %v108, %v167
    %v190 = vsub.f32 %v110, %v170
    %v191 = vsub.f32 %v112, %v173
    %v192 = vsub.f32 %v114, %v176
    %v193 = vsub.f32 %v116, %v179
    %v194 = vsub.f32 %v118, %v182
    %v195 = vsub.f32 %v120, %v185
    %v196 = vsub.f32 %v122, %v188
    %v197 = vsub.f32 0.0, %v189
    %v198 = vsub.f32 0.0, %v190
    %v199 = vsub.f32 0.0, %v191
    %v200 = vsub.f32 0.0, %v192
    %v201 = vsub.f32 0.0, %v193
    %v202 = vsub.f32 0.0, %v194
    %v203 = vsub.f32 0.0, %v195
    %v204 = vsub.f32 0.0, %v196
    %v205 = vmul.f32 %v197, 1.442695
    %v206 = vpow.pop %v205
    %v207 = vmul.f32 %v198, 1.442695
    %v208 = vpow.pop %v207
    %v209 = vmul.f32 %v199, 1.442695
    %v210 = vpow.pop %v209
    %v211 = vmul.f32 %v200, 1.442695
    %v212 = vpow.pop %v211
    %v213 = vmul.f32 %v201, 1.442695
    %v214 = vpow.pop %v213
    %v215 = vmul.f32 %v202, 1.442695
    %v216 = vpow.pop %v215
    %v217 = vmul.f32 %v203, 1.442695
    %v218 = vpow.pop %v217
    %v219 = vmul.f32 %v204, 1.442695
    %v220 = vpow.pop %v219
    %v221 = vsub.f32 1.0, %v206
    %v222 = vsub.f32 1.0, %v208
    %v223 = vsub.f32 1.0, %v210
    %v224 = vsub.f32 1.0, %v212
    %v225 = vsub.f32 1.0, %v214
    %v226 = vsub.f32 1.0, %v216
    %v227 = vsub.f32 1.0, %v218
    %v228 = vsub.f32 1.0, %v220
    %v229 = vmax.f32 %v221, 0.0
    %v230 = vmax.f32 %v222, 0.0
    %v231 = vmax.f32 %v223, 0.0
    %v232 = vmax.f32 %v224, 0.0
    %v233 = vmax.f32 %v225, 0.0
    %v234 = vmax.f32 %v226, 0.0
    %v235 = vmax.f32 %v227, 0.0
    %v236 = vmax.f32 %v228, 0.0
    %v237 = vmul.f32 %v229, %v229
    %v238 = vmul.f32 %v230, %v230
    %v239 = vmul.f32 %v231, %v231
    %v240 = vmul.f32 %v232, %v232
    %v241 = vmul.f32 %v233, %v233
    %v242 = vmul.f32 %v234, %v234
    %v243 = vmul.f32 %v235, %v235
    %v244 = vmul.f32 %v236, %v236
    %v245 = vmul.f32 %v237, %v189
    %v246 = vmul.f32 %v238, %v190
    %v247 = vmul.f32 %v239, %v191
    %v248 = vmul.f32 %v240, %v192
    %v249 = vmul.f32 %v241, %v193
    %v250 = vmul.f32 %v242, %v194
    %v251 = vmul.f32 %v243, %v195
    %v252 = vmul.f32 %v244, %v196
    %s253 = smul.u32 0, 64
    %v254 = vlaneseq
    %v255 = vshrl.u32 %v254, 7
    %v256 = vadd.s32 %v255, 8
    %v257 = vadd.s32 %v255, 16
    %v258 = vadd.s32 %v255, 24
    %v259 = vadd.s32 %v255, 32
    %v260 = vadd.s32 %v255, 40
    %v261 = vadd.s32 %v255, 48
    %v262 = vadd.s32 %v255, 56
    %v263 = vstv %s253
    %v264 = vadd.s32 %v263, %v255
    %v265 = vadd.s32 %v263, %v256
    %v266 = vadd.s32 %v263, %v257
    %v267 = vadd.s32 %v263, %v258
    %v268 = vadd.s32 %v263, %v259
    %v269 = vadd.s32 %v263, %v260
    %v270 = vadd.s32 %v263, %v261
    %v271 = vadd.s32 %v263, %v262
    %vm272 = vcmp.lt.s32.totalorder %v264, 64
    %vm273 = vcmp.lt.s32.totalorder %v265, 64
    %vm274 = vcmp.lt.s32.totalorder %v266, 64
    %vm275 = vcmp.lt.s32.totalorder %v267, 64
    %vm276 = vcmp.lt.s32.totalorder %v268, 64
    %vm277 = vcmp.lt.s32.totalorder %v269, 64
    %vm278 = vcmp.lt.s32.totalorder %v270, 64
    %vm279 = vcmp.lt.s32.totalorder %v271, 64
    %v280 = vsel %vm272, %v245, 0.0
    %v281 = vsel %vm273, %v246, 0.0
    %v282 = vsel %vm274, %v247, 0.0
    %v283 = vsel %vm275, %v248, 0.0
    %v284 = vsel %vm276, %v249, 0.0
    %v285 = vsel %vm277, %v250, 0.0
    %v286 = vsel %vm278, %v251, 0.0
    %v287 = vsel %vm279, %v252, 0.0
    %v288 = vld [vmem:[#allocation2] sm:$0x1]
    %vm289 = vcmask 7168
    %v290 = vsel %vm289, %v280, 0.0
    %v291 = vsel %vm289, %v281, 0.0
    %v292 = vadd.f32 %v290, %v291
    %v293 = vsel %vm289, %v282, 0.0
    %v294 = vadd.f32 %v292, %v293
    %v295 = vsel %vm289, %v283, 0.0
    %v296 = vadd.f32 %v294, %v295
    %v297 = vsel %vm289, %v284, 0.0
    %v298 = vadd.f32 %v296, %v297
    %v299 = vsel %vm289, %v285, 0.0
    %v300 = vadd.f32 %v298, %v299
    %v301 = vsel %vm289, %v286, 0.0
    %v302 = vadd.f32 %v300, %v301
    %v303 = vsel %vm289, %v287, 0.0
    %v304 = vadd.f32 %v302, %v303
    %305 = vadd.xlane.f32.xlu0 %v304
    %v306 = vpop.xlane.xlu0 %305
    %v307 = vrot.slane %v306, 4
    %v308 = vadd.f32 %v306, %v307
    %v309 = vrot.slane %v308, 2
    %v310 = vadd.f32 %v308, %v309
    %v311 = vrot.slane %v310, 1
    %v312 = vadd.f32 %v310, %v311
    %s313 = vtos %v312
    %v314 = vstv %s313
    %v315 = vadd.f32 %v288, %v314
    %vm316 = vcmask 0
    %317 = vst.msk [vmem:[#allocation2] sm:$0x1] %vm316, %v315
    // Predicated region
    $region14: #{tpu_custom_call.1} parent=1 // pred_check
      %p318 = pneg %p12
    $region15: #{tpu_custom_call.1} parent=1 // pred_check_branch
      %320 = sbr.rel (%p318) target = $region17
    $region16: #{tpu_custom_call.1} parent=1 // pred_region
      %v321 = vld [vmem:[#allocation2] sm:$0x1]
      %v322 = vrcp.pop 64.0
      %v323 = vmul.f32 %v321, %v322
      %324 = vst.msk [vmem:[#allocation3] sm:$0x1] %vm316, %v323
    $region17: #{tpu_custom_call.1} parent=1 // pred_fallthru
      _
    // Predicated region
    $region18: #{tpu_custom_call.1} parent=1 // pred_check
      _
    $region19: #{tpu_custom_call.1} parent=1 // pred_check_branch
      %326 = sbr.rel (0) target = $region21
    $region20: #{tpu_custom_call.1} parent=1 // pred_region
      %s328 = ssub.s32 16, 16
      %329 = vsyncadd [#allocation4], %s328
      %s331 = sshll.u32 [#allocation3], 4
      %s332 = int_to_ptr.vmem [resolvable:$true] %s331
      %334 = dma.vmem_to_hbm [thread:$0]  %s332, 16, %s2, [#allocation4]
    $region21: #{tpu_custom_call.1} parent=1 // pred_fallthru
      _
    // Predicated region
    $region22: #{tpu_custom_call.1} parent=1 // pred_check
      _
    $region23: #{tpu_custom_call.1} parent=1 // pred_check_branch
      %336 = sbr.rel (0) target = $region25
    $region24: #{tpu_custom_call.1} parent=1 // pred_region
      %337 = dma.done [#allocation4], 16
    $region25: #{tpu_custom_call.1} parent=1 // pred_fallthru
      _
    %338 = vsyncpa [#allocation4], 1

</llo_original>
